<compile_context>
chip_gen: v6e
topology: v6e:2x2x1
jax: 0.10.0
libtpu: 0.0.40
codegen_flags: <defaults>
</compile_context>

<pallas_src>
import jax
import jax.numpy as jnp
from jax.experimental import pallas as pl
from jax.experimental.pallas import tpu as pltpu


_MIB = 1024 * 1024


def _vmem_budget():
    """Generation-aware VMEM sizing (v5e/v6e: 128 MiB, v7x: 64 MiB per TensorCore)."""
    try:
        phys = int(pltpu.get_tpu_info().vmem_capacity_bytes)
    except Exception:
        phys = 64 * _MIB          # conservative fallback = v7x per-core capacity
    phys = max(phys, 32 * _MIB)
    vmem_limit = phys - 8 * _MIB  # hard scoped-VMEM limit handed to Mosaic
    budget = int(phys * 0.70)     # what the double-buffered pipeline may consume
    return budget, vmem_limit


def _choose_tb(B, S, U, enc_itemsize, out_itemsize, budget_bytes):
    """Pick the batch-tile size TB from the VMEM budget + grid-split policy."""
    sp = pl.cdiv(S, 8) * 8            # sublane padding of the (S, U) encoder tile
    up = pl.cdiv(U, 128) * 128        # lane padding of U
    slp = pl.cdiv(S, 128) * 128       # lane padding of the (1, S) tiles

    enc_row = enc_itemsize * sp * up              # encoder block bytes per batch row
    att_row = enc_itemsize * 8 * up               # attended (1, U) padded to 8 sublanes
    out_row = out_itemsize * 8 * slp              # output (1, S) padded to 8 sublanes
    tmp_row = 4 * 8 * slp * 4                     # in-kernel f32 score/softmax temporaries
    row_bytes = 2 * (enc_row + att_row + out_row) + tmp_row   # double-buffered pipeline

    if row_bytes > budget_bytes:
        # TODO(synk): add an S-tiled online-softmax fallback for very long sequences.
        raise NotImplementedError(
            f"a single (1, {S}, {U}) encoder block ({row_bytes / 2**20:.1f} MiB "
            "double-buffered) exceeds the VMEM pipeline budget; S-tiling is not implemented")

    tb = max(1, budget_bytes // row_bytes)        # biggest tile the budget allows
    # Grid-split policy: keep >=2 grid steps whenever B >= 2 (both v7x TensorCores
    # busy + pipeline overlap) and >=4 steps for larger batches.  These grid
    # constraints take priority over the "stream a few MiB per step" floor, which
    # the large generation-aware budget otherwise satisfies automatically.
    if B >= 8:
        tb = min(tb, pl.cdiv(B, 4))
    elif B >= 2:
        tb = min(tb, pl.cdiv(B, 2))
    return int(min(tb, B))


def _luong_attention_kernel(a_ref, e_ref, o_ref):
    # a_ref: (TB, 1, U)  attended = hidden @ W^T (cast to the encoder dtype)
    # e_ref: (TB, S, U)  encoder outputs, streamed in their native dtype
    # o_ref: (TB, 1, S)  attention weights
    a = a_ref[...]
    e = e_ref[...]

    # score[b, 0, s] = <attended[b, :], encoder[b, s, :]>
    # Batched MXU contraction over the shared last dim (flash-attention style),
    # f32 accumulation.  Keeps the per-element reduction off the XLU lane-rotate
    # path that binds on v7x (and small-U v6e) where HBM is much faster.
    score = jnp.einsum("bqu,bsu->bqs", a, e,
                       preferred_element_type=jnp.float32)          # (TB, 1, S)

    # Numerically stable softmax over the sequence (lane) axis, in f32.
    m = jnp.max(score, axis=-1, keepdims=True)
    p = jnp.exp(score - m)
    denom = jnp.sum(p, axis=-1, keepdims=True)

    # EUP approximate reciprocal + one Newton step on the VPU -> ~f32 accuracy,
    # both units otherwise idle in this memory-bound kernel.
    inv = pl.reciprocal(denom, approx=True)
    inv = inv * (2.0 - denom * inv)

    o_ref[...] = (p * inv).astype(o_ref.dtype)


def luong_attention(hidden: jax.Array, encoder_outputs: jax.Array, weight: jax.Array):
    """hidden: [B, U], encoder_outputs: [B, S, U], weight: [U, U] -> weights [B, S]."""
    B, U = hidden.shape
    _, S, _ = encoder_outputs.shape
    out_dtype = jnp.result_type(hidden.dtype, encoder_outputs.dtype)

    # Hoisted bias-free linear: one well-shaped XLA/MXU matmul shared across the
    # batch (keeps the (U, U) weight out of the kernel's VMEM entirely), then cast
    # to the encoder dtype so the in-kernel contraction streams bf16 when the
    # inputs are bf16.
    attended = jnp.dot(hidden, weight.T, preferred_element_type=jnp.float32,
                       precision=jax.lax.Precision.HIGHEST)
    attended = attended.astype(encoder_outputs.dtype)[:, None, :]    # (B, 1, U)

    budget, vmem_limit = _vmem_budget()
    tb = _choose_tb(B, S, U,
                    enc_itemsize=encoder_outputs.dtype.itemsize,
                    out_itemsize=jnp.dtype(out_dtype).itemsize,
                    budget_bytes=budget)
    grid = (pl.cdiv(B, tb),)

    out = pl.pallas_call(
        _luong_attention_kernel,
        out_shape=jax.ShapeDtypeStruct((B, 1, S), out_dtype),
        grid_spec=pltpu.PrefetchScalarGridSpec(
            num_scalar_prefetch=0,
            grid=grid,
            in_specs=[
                pl.BlockSpec((tb, 1, U), lambda i: (i, 0, 0)),        # attended rows
                pl.BlockSpec((tb, S, U), lambda i: (i, 0, 0)),        # encoder outputs
            ],
            out_specs=pl.BlockSpec((tb, 1, S), lambda i: (i, 0, 0)),  # S stays on lanes
        ),
        compiler_params=pltpu.CompilerParams(
            dimension_semantics=("parallel",),
            vmem_limit_bytes=vmem_limit,
        ),
    )(attended, encoder_outputs)

    return out.reshape(B, S)   # free metadata reshape outside the kernel


def _reference(hidden, encoder_outputs, weight):
    attended = jnp.dot(hidden, weight.T, precision=jax.lax.Precision.HIGHEST)   # (B, U)
    score = jnp.einsum("bsu,bu->bs", encoder_outputs, attended,
                       precision=jax.lax.Precision.HIGHEST)                     # (B, S)
    return jax.nn.softmax(score, axis=1)


if __name__ == "__main__":
    B, S, U = 2, 8, 32

    key = jax.random.PRNGKey(0)
    k_h, k_e, k_w = jax.random.split(key, 3)

    hidden = jax.random.normal(k_h, (B, U), dtype=jnp.float32)
    encoder_outputs = jax.random.normal(k_e, (B, S, U), dtype=jnp.float32)
    # Deterministic init for nn.Linear(units, units, bias=False).weight, shape (U, U)
    weight = jax.random.uniform(
        k_w, (U, U), dtype=jnp.float32, minval=-(U ** -0.5), maxval=U ** -0.5
    )

    out = luong_attention(hidden, encoder_outputs, weight)
    jax.block_until_ready(out)

    ref = _reference(hidden, encoder_outputs, weight)
    assert out.shape == (B, S)
    assert out.dtype == hidden.dtype
    # Typically the kernel agrees with the f32 reference to ~1e-6; the loose
    # tolerance only guards the case where the compiler evaluates the in-kernel
    # f32 MXU contraction with a reduced-precision (bf16-pass) algorithm.
    assert jnp.allclose(out, ref, atol=2e-2, rtol=2e-2), "mismatch vs reference"
    # Softmax normalization is exact regardless of matmul precision.
    assert jnp.allclose(jnp.sum(out, axis=1), 1.0, atol=1e-3), "softmax rows must sum to 1"

    print("KERNEL_OK")
</pallas_src>

<mosaic_0001>
module attributes {stable_mosaic.version = 11 : i64} {
  func.func @_luong_attention_kernel(%arg0: i32, %arg1: memref<1x1x32xf32, #tpu.memory_space<vmem>>, %arg2: memref<1x8x32xf32, #tpu.memory_space<vmem>>, %arg3: memref<1x1x8xf32, #tpu.memory_space<vmem>>) attributes {dimension_semantics = [#tpu.dimension_semantics<parallel>], iteration_bounds = array<i64: 2>, scalar_prefetch = 0 : i64, scratch_operands = 0 : i64, tpu.core_type = #tpu.core_type<tc>, window_params = [{transform_indices = @transform_0, window_bounds = array<i64: 1, 1, 32>}, {transform_indices = @transform_1, window_bounds = array<i64: 1, 8, 32>}, {transform_indices = @transform_2, window_bounds = array<i64: 1, 1, 8>}]} {
    %c0 = arith.constant 0 : index
    %c0_0 = arith.constant 0 : index
    %c0_1 = arith.constant 0 : index
    %0 = vector.load %arg1[%c0, %c0_0, %c0_1] : memref<1x1x32xf32, #tpu.memory_space<vmem>>, vector<1x1x32xf32>
    %c0_2 = arith.constant 0 : index
    %c0_3 = arith.constant 0 : index
    %c0_4 = arith.constant 0 : index
    %1 = vector.load %arg2[%c0_2, %c0_3, %c0_4] : memref<1x8x32xf32, #tpu.memory_space<vmem>>, vector<1x8x32xf32>
    "tpu.trace_start"() <{level = 10 : i32, message = "bqu,bsu->bqs"}> : () -> ()
    %cst = arith.constant dense<0.000000e+00> : vector<1x1x8xf32>
    %2 = tpu.matmul %0, %1, %cst {dimension_numbers = #tpu.dot_dimension_numbers<[2], [2], [1], [1], [0, 0, 0, 1, 1, 1], [0], [0]>} : vector<1x1x32xf32>, vector<1x8x32xf32>, vector<1x1x8xf32> -> vector<1x1x8xf32>
    "tpu.trace_stop"() : () -> ()
    %cst_5 = arith.constant dense<0xFF800000> : vector<1x1xf32>
    %3 = vector.multi_reduction <maximumf>, %2, %cst_5 [2] : vector<1x1x8xf32> to vector<1x1xf32>
    %4 = vector.shape_cast %3 : vector<1x1xf32> to vector<1x1x1xf32>
    %5 = vector.broadcast %4 : vector<1x1x1xf32> to vector<1x1x8xf32>
    %6 = arith.subf %2, %5 : vector<1x1x8xf32>
    %7 = math.exp %6 : vector<1x1x8xf32>
    %cst_6 = arith.constant dense<0.000000e+00> : vector<1x1xf32>
    %8 = vector.multi_reduction <add>, %7, %cst_6 [2] : vector<1x1x8xf32> to vector<1x1xf32>
    %9 = vector.shape_cast %8 : vector<1x1xf32> to vector<1x1x1xf32>
    %10 = tpu.reciprocal %9 {approx = true} : vector<1x1x1xf32> -> vector<1x1x1xf32>
    %11 = arith.mulf %9, %10 : vector<1x1x1xf32>
    %cst_7 = arith.constant 2.000000e+00 : f32
    %12 = vector.broadcast %cst_7 : f32 to vector<1x1x1xf32>
    %13 = arith.subf %12, %11 : vector<1x1x1xf32>
    %14 = arith.mulf %10, %13 : vector<1x1x1xf32>
    %15 = vector.broadcast %14 : vector<1x1x1xf32> to vector<1x1x8xf32>
    %16 = arith.mulf %7, %15 : vector<1x1x8xf32>
    %c0_8 = arith.constant 0 : index
    %c0_9 = arith.constant 0 : index
    %c0_10 = arith.constant 0 : index
    %17 = vector.load %arg3[%c0_8, %c0_9, %c0_10] : memref<1x1x8xf32, #tpu.memory_space<vmem>>, vector<1x1x8xf32>
    tpu.vector_store %arg3[%c0_8, %c0_9, %c0_10], %16 {strides = array<i32>} : memref<1x1x8xf32, #tpu.memory_space<vmem>>, vector<1x1x8xf32>,
    return
  }
  func.func @transform_0(%arg0: i32) -> (i32, i32, i32) {
    %c0_i32 = arith.constant 0 : i32
    %c0_i32_0 = arith.constant 0 : i32
    %c0_i32_1 = arith.constant 0 : i32
    return %arg0, %c0_i32, %c0_i32_0 : i32, i32, i32
  }
  func.func @transform_1(%arg0: i32) -> (i32, i32, i32) {
    %c0_i32 = arith.constant 0 : i32
    %c0_i32_0 = arith.constant 0 : i32
    %c0_i32_1 = arith.constant 0 : i32
    return %arg0, %c0_i32, %c0_i32_0 : i32, i32, i32
  }
  func.func @transform_2(%arg0: i32) -> (i32, i32, i32) {
    %c0_i32 = arith.constant 0 : i32
    %c0_i32_0 = arith.constant 0 : i32
    %c0_i32_1 = arith.constant 0 : i32
    return %arg0, %c0_i32, %c0_i32_0 : i32, i32, i32
  }
}

</mosaic_0001>

<llo_original>
// kernel: tpu_custom_call.1
$region0: #{tpu_custom_call.1}
  #allocation0 [shape = 'u32[]', space=smem, size = 0x4, offset = 0x4, fixed_abs, tag = 'smem constant byte address 0x4 - core index']
  #allocation1 [shape = 'u32[144,128]{1,0:T(1,128)}', space=vmem, size = 0x12000, scoped, tag = 'internal scratch']
  %s0 = inlined_call_operand.hbm [shape: f32[2,1,32], index: 0, kind: input, shape index: {}]
  %s1 = inlined_call_operand.hbm [shape: f32[2,8,32], index: 1, kind: input, shape index: {}]
  %s2 = inlined_call_operand.hbm [shape: f32[2,1,8], index: 2, kind: output, shape index: {}]
  %s3 = sld [smem:[#allocation0]]
  $region49: #{tpu_custom_call.1} parent=0
    _
  %s5 = ssub.s32 1, %s3
  %s6 = scalar_select 0, %s5, %s3
  $region1: #{tpu_custom_call.1} parent=0
    #allocation2 [shape = 'u8[1024]{0}', space=vmem, size = 0x400, scoped, tag = 'input window, operand 0']
    #allocation3 [shape = 's32[2]{0}', space=sflag, size = 0x8, scoped, tag = 'scoped memory for tpu_custom_call.1']
    #allocation4 [shape = 's32[2]{0}', space=sflag, size = 0x8, scoped, tag = 'scoped memory for tpu_custom_call.1']
    #allocation5 [shape = 'u8[8192]{0}', space=vmem, size = 0x2000, scoped, tag = 'input window, operand 1']
    #allocation6 [shape = 's32[2]{0}', space=sflag, size = 0x8, scoped, tag = 'scoped memory for tpu_custom_call.1']
    #allocation7 [shape = 'u8[1024]{0}', space=vmem, size = 0x400, scoped, tag = 'output window, operand 0']
    %7 = vsyncpa [#allocation3], 0
    %s8 = scalar_lea.sflag [#allocation3], 1
    %9 = vsyncpa %s8, 0
    %10 = vsyncpa [#allocation6], 0
    %s11 = scalar_lea.sflag [#allocation6], 1
    %12 = vsyncpa %s11, 0
    %13 = vsyncpa [#allocation4], 0
    %s14 = scalar_lea.sflag [#allocation4], 1
    %15 = vsyncpa %s14, 0
    loop: start=0, step=1, limit=4
    $region2: #{tpu_custom_call.1} parent=1 // loop_pre_header
      _
    $region3: #{tpu_custom_call.1} parent=1 // loop_header
      %s17 = sphi 0, %s21
      %p18 = scmp.ge.s32.totalorder %s17, 4
      %s27 = sphi 0, %s29
      %s30 = sphi 0, %s27
      %s31 = sphi 0, %s30
      %s47 = sphi 0, %s31
      %s53 = sphi 0, %s55
      %s56 = sphi 0, %s53
      %s57 = sphi 0, %s56
      %s73 = sphi 0, %s57
      %s79 = sphi 0, %s81
      %s82 = sphi 0, %s79
      %s83 = sphi 0, %s82
      %s99 = sphi 0, %s83
    $region4: #{tpu_custom_call.1} parent=1 // loop_header_branch
      %20 = sbr.rel (%p18) target = $region8
    $region5: #{tpu_custom_call.1} parent=1 // loop_body
      %s22 = ssub.s32 %s17, 1
      %s23 = ssub.s32 %s17, 2
      %s24 = sadd.s32 %s17, 1
      %s25 = ssub.s32 %s17, %s24
      %p26 = scmp.eq.s32.totalorder %s25, 0
      %s28 = sadd.s32 %s27, 1
      %s29 = scalar_select %p26, %s27, %s28
      %p32 = pneg %p26
      %p33 = scmp.eq.s32.totalorder %s17, 1
      %p34 = por %p32, %p33
      %p35 = scmp.ne.s32.totalorder %s27, %s30
      %p36 = scmp.eq.s32.totalorder %s17, 0
      %p37 = por %p35, %p36
      %p38 = scmp.ne.s32.totalorder %s27, %s30
      %p39 = scmp.eq.s32.totalorder %s22, 1
      %p40 = por %p38, %p39
      %p41 = scmp.ne.s32.totalorder %s30, %s31
      %p42 = scmp.eq.s32.totalorder %s22, 0
      %p43 = por %p41, %p42
      %p44 = scmp.ne.s32.totalorder %s30, %s31
      %p45 = scmp.eq.s32.totalorder %s23, 1
      %p46 = por %p44, %p45
      %p48 = scmp.ne.s32.totalorder %s31, %s47
      %p49 = scmp.eq.s32.totalorder %s23, 0
      %p50 = por %p48, %p49
      %s51 = ssub.s32 %s17, %s24
      %p52 = scmp.eq.s32.totalorder %s51, 0
      %s54 = sadd.s32 %s53, 1
      %s55 = scalar_select %p52, %s53, %s54
      %p58 = pneg %p52
      %p59 = scmp.eq.s32.totalorder %s17, 1
      %p60 = por %p58, %p59
      %p61 = scmp.ne.s32.totalorder %s53, %s56
      %p62 = scmp.eq.s32.totalorder %s17, 0
      %p63 = por %p61, %p62
      %p64 = scmp.ne.s32.totalorder %s53, %s56
      %p65 = scmp.eq.s32.totalorder %s22, 1
      %p66 = por %p64, %p65
      %p67 = scmp.ne.s32.totalorder %s56, %s57
      %p68 = scmp.eq.s32.totalorder %s22, 0
      %p69 = por %p67, %p68
      %p70 = scmp.ne.s32.totalorder %s56, %s57
      %p71 = scmp.eq.s32.totalorder %s23, 1
      %p72 = por %p70, %p71
      %p74 = scmp.ne.s32.totalorder %s57, %s73
      %p75 = scmp.eq.s32.totalorder %s23, 0
      %p76 = por %p74, %p75
      %s77 = ssub.s32 %s17, %s24
      %p78 = scmp.eq.s32.totalorder %s77, 0
      %s80 = sadd.s32 %s79, 1
      %s81 = scalar_select %p78, %s79, %s80
      %p84 = pneg %p78
      %p85 = scmp.eq.s32.totalorder %s17, 1
      %p86 = por %p84, %p85
      %p87 = scmp.ne.s32.totalorder %s79, %s82
      %p88 = scmp.eq.s32.totalorder %s17, 0
      %p89 = por %p87, %p88
      %p90 = scmp.ne.s32.totalorder %s79, %s82
      %p91 = scmp.eq.s32.totalorder %s22, 1
      %p92 = por %p90, %p91
      %p93 = scmp.ne.s32.totalorder %s82, %s83
      %p94 = scmp.eq.s32.totalorder %s22, 0
      %p95 = por %p93, %p94
      %p96 = scmp.ne.s32.totalorder %s82, %s83
      %p97 = scmp.eq.s32.totalorder %s23, 1
      %p98 = por %p96, %p97
      %p100 = scmp.ne.s32.totalorder %s83, %s99
      %p101 = scmp.eq.s32.totalorder %s23, 0
      %p102 = por %p100, %p101
      %p103 = scmp.le.s32.totalorder 1, %s17
      %p104 = scmp.lt.s32.totalorder %s17, 3
      %p105 = pnand %p103, %p104
      %p106 = pneg %p105
      // Predicated region
      $region9: #{tpu_custom_call.1} parent=5 // pred_check
        _
      $region10: #{tpu_custom_call.1} parent=5 // pred_check_branch
        %108 = sbr.rel (%p105) target = $region12
      $region11: #{tpu_custom_call.1} parent=5 // pred_region
        %s109 = ssub.s32 %s17, 1
      $region12: #{tpu_custom_call.1} parent=5 // pred_fallthru
        _
      %p110 = scmp.lt.s32.totalorder %s17, 2
      // Predicated region
      $region13: #{tpu_custom_call.1} parent=5 // pred_check
        %p111 = pneg %p110
      $region14: #{tpu_custom_call.1} parent=5 // pred_check_branch
        %113 = sbr.rel (%p111) target = $region16
      $region15: #{tpu_custom_call.1} parent=5 // pred_region
        // Predicated region
        $region17: #{tpu_custom_call.1} parent=15 // pred_check
          %p114 = pneg %p37
        $region18: #{tpu_custom_call.1} parent=15 // pred_check_branch
          %116 = sbr.rel (%p114) target = $region20
        $region19: #{tpu_custom_call.1} parent=15 // pred_region
          %s117 = sand.u32 %s27, 1
          %s118 = scalar_lea.sflag [#allocation3], %s117
          %s119 = sand.u32 %s27, 1
          %s120 = scalar_lea.vmem [#allocation2], %s119
          %s122 = ssub.s32 16, 16
          %123 = vsyncadd %s118, %s122
          %s124 = smul.addr %s17, 16
          %s125 = scalar_lea.hbm %s0, %s124
          %s127 = sshll.u32 %s120, 4
          %s128 = int_to_ptr.vmem [resolvable:$true] %s127
          %130 = dma.hbm_to_vmem [thread:$0]  %s125, 16, %s128, %s118
        $region20: #{tpu_custom_call.1} parent=15 // pred_fallthru
          _
        // Predicated region
        $region21: #{tpu_custom_call.1} parent=15 // pred_check
          %p131 = pneg %p63
        $region22: #{tpu_custom_call.1} parent=15 // pred_check_branch
          %133 = sbr.rel (%p131) target = $region24
        $region23: #{tpu_custom_call.1} parent=15 // pred_region
          %s134 = sand.u32 %s53, 1
          %s135 = scalar_lea.sflag [#allocation6], %s134
          %s136 = sand.u32 %s53, 1
          %s137 = smul.addr %s136, 8
          %s138 = scalar_lea.vmem [#allocation5], %s137
          %s140 = ssub.s32 128, 128
          %141 = vsyncadd %s135, %s140
          %s142 = smul.addr %s17, 128
          %s143 = scalar_lea.hbm %s1, %s142
          %s145 = sshll.u32 %s138, 4
          %s146 = int_to_ptr.vmem [resolvable:$true] %s145
          %148 = dma.hbm_to_vmem [thread:$0]  %s143, 128, %s146, %s135
        $region24: #{tpu_custom_call.1} parent=15 // pred_fallthru
          _
      $region16: #{tpu_custom_call.1} parent=5 // pred_fallthru
        _
      %p149 = scmp.le.s32.totalorder 1, %s17
      %p150 = scmp.lt.s32.totalorder %s17, 3
      %p151 = pnand %p149, %p150
      %p152 = pneg %p151
      // Predicated region
      $region25: #{tpu_custom_call.1} parent=5 // pred_check
        _
      $region26: #{tpu_custom_call.1} parent=5 // pred_check_branch
        %154 = sbr.rel (%p151) target = $region28
      $region27: #{tpu_custom_call.1} parent=5 // pred_region
        %s155 = ssub.s32 %s17, 1
        %s156 = sand.u32 %s30, 1
        %s157 = scalar_lea.sflag [#allocation3], %s156
        %s158 = sand.u32 %s30, 1
        %s159 = scalar_lea.vmem [#allocation2], %s158
        // Predicated region
        $region29: #{tpu_custom_call.1} parent=27 // pred_check
          %p160 = pneg %p43
        $region30: #{tpu_custom_call.1} parent=27 // pred_check_branch
          %162 = sbr.rel (%p160) target = $region32
        $region31: #{tpu_custom_call.1} parent=27 // pred_region
          %163 = dma.done %s157, 16
        $region32: #{tpu_custom_call.1} parent=27 // pred_fallthru
          _
        %s164 = sand.u32 %s56, 1
        %s165 = scalar_lea.sflag [#allocation6], %s164
        %s166 = sand.u32 %s56, 1
        %s167 = smul.addr %s166, 8
        %s168 = scalar_lea.vmem [#allocation5], %s167
        // Predicated region
        $region33: #{tpu_custom_call.1} parent=27 // pred_check
          %p169 = pneg %p69
        $region34: #{tpu_custom_call.1} parent=27 // pred_check_branch
          %171 = sbr.rel (%p169) target = $region36
        $region35: #{tpu_custom_call.1} parent=27 // pred_region
          %172 = dma.done %s165, 128
        $region36: #{tpu_custom_call.1} parent=27 // pred_fallthru
          _
        %s173 = sand.u32 %s30, 1
        %s174 = scalar_lea.sflag [#allocation3], %s173
        %s175 = sand.u32 %s30, 1
        %s176 = scalar_lea.vmem [#allocation2], %s175
        %p177 = pneg %p43
        %p178 = pneg %p40
        %s179 = sand.u32 %s56, 1
        %s180 = scalar_lea.sflag [#allocation6], %s179
        %s181 = sand.u32 %s56, 1
        %s182 = smul.addr %s181, 8
        %s183 = scalar_lea.vmem [#allocation5], %s182
        %p184 = pneg %p69
        %p185 = pneg %p66
        %p186 = pneg %p95
        %p187 = pneg %p92
        %s188 = sand.u32 %s82, 1
        %s189 = scalar_lea.sflag [#allocation4], %s188
        %s190 = sand.u32 %s82, 1
        %s191 = scalar_lea.vmem [#allocation7], %s190
        %v192 = vld [vmem:[%s159] sm:$0x1]
        %v193 = vld [vmem:[%s168] sm:$0xff]
        %vm194 = vcmask 261120
        %v196 = vsel %vm194, %v192, 0
        %v199 = vsel %vm194, %v193, 0
        %201 = vmatprep.subr.mxu0 0.0
        %202 = vmatpush1.xpose.msra.mxu0 0.0
        %203 = vmatprep.subr.mxu0 0.0
        %204 = vmatpush1.xpose.msra.mxu0 0.0
        %205 = vmatprep.subr.mxu0 0.0
        %206 = vmatpush1.xpose.msra.mxu0 0.0
        %207 = vmatprep.subr.mxu0 0.0
        %208 = vmatpush1.xpose.msra.mxu0 0.0
        %209 = vmatprep.subr.mxu0 0.0
        %210 = vmatpush1.xpose.msra.mxu0 0.0
        %211 = vmatprep.subr.mxu0 0.0
        %212 = vmatpush1.xpose.msra.mxu0 0.0
        %213 = vmatprep.subr.mxu0 0.0
        %214 = vmatpush1.xpose.msra.mxu0 0.0
        %215 = vmatprep.subr.mxu0 0.0
        %216 = vmatpush1.xpose.msra.mxu0 0.0
        %217 = vmatprep.subr.mxu0 0.0
        %218 = vmatpush1.xpose.msra.mxu0 0.0
        %219 = vmatprep.subr.mxu0 0.0
        %220 = vmatpush1.xpose.msra.mxu0 0.0
        %221 = vmatprep.subr.mxu0 0.0
        %222 = vmatpush1.xpose.msra.mxu0 0.0
        %223 = vmatprep.subr.mxu0 0.0
        %224 = vmatpush1.xpose.msra.mxu0 0.0
        %225 = vmatprep.subr.mxu0 0.0
        %226 = vmatpush1.xpose.msra.mxu0 0.0
        %227 = vmatprep.subr.mxu0 0.0
        %228 = vmatpush1.xpose.msra.mxu0 0.0
        %229 = vmatprep.subr.mxu0 0.0
        %230 = vmatpush1.xpose.msra.mxu0 0.0
        %231 = vmatprep.subr.mxu0 0.0
        %232 = vmatpush1.xpose.msra.mxu0 %v199
        %233 = vmatprep.subr.mxu0 0.0
        %234 = vmatpush2.xpose.msra.mxu0 0.0
        %235 = vmatprep.subr.mxu0 0.0
        %236 = vmatpush2.xpose.msra.mxu0 0.0
        %237 = vmatprep.subr.mxu0 0.0
        %238 = vmatpush2.xpose.msra.mxu0 0.0
        %239 = vmatprep.subr.mxu0 0.0
        %240 = vmatpush2.xpose.msra.mxu0 0.0
        %241 = vmatprep.subr.mxu0 0.0
        %242 = vmatpush2.xpose.msra.mxu0 0.0
        %243 = vmatprep.subr.mxu0 0.0
        %244 = vmatpush2.xpose.msra.mxu0 0.0
        %245 = vmatprep.subr.mxu0 0.0
        %246 = vmatpush2.xpose.msra.mxu0 0.0
        %247 = vmatprep.subr.mxu0 0.0
        %248 = vmatpush2.xpose.msra.mxu0 0.0
        %249 = vmatprep.subr.mxu0 0.0
        %250 = vmatpush2.xpose.msra.mxu0 0.0
        %251 = vmatprep.subr.mxu0 0.0
        %252 = vmatpush2.xpose.msra.mxu0 0.0
        %253 = vmatprep.subr.mxu0 0.0
        %254 = vmatpush2.xpose.msra.mxu0 0.0
        %255 = vmatprep.subr.mxu0 0.0
        %256 = vmatpush2.xpose.msra.mxu0 0.0
        %257 = vmatprep.subr.mxu0 0.0
        %258 = vmatpush2.xpose.msra.mxu0 0.0
        %259 = vmatprep.subr.mxu0 0.0
        %260 = vmatpush2.xpose.msra.mxu0 0.0
        %261 = vmatprep.subr.mxu0 0.0
        %262 = vmatpush2.xpose.msra.mxu0 0.0
        %263 = vmatprep.subr.mxu0 0.0
        %264 = vmatpush2.xpose.msra.mxu0 0.0
        %265 = vmatprep.mubr.f32.mxu0 0.0
        %266 = vmatmul.mubr.f32.gmra.mxu0 %v196
        %v267 = vpop.f32.mrf.mxu0
        %v268 = vadd.f32 0.0, %v267
        %v269 = vpop.f32.mrf.mxu0
        %270 = vdwg.mxu0
        %vm271 = vcmask 57344
        %v272 = vsel %vm271, %v268, -inf
        %273 = vmax.xlane.f32.xlu0 %v272
        %v274 = vpop.xlane.xlu0 %273
        %v275 = vsub.f32 %v268, %v274
        %v276 = vmul.f32 %v275, 1.442695
        %v277 = vpow.pop %v276
        %v278 = vsel %vm271, %v277, 0.0
        %279 = vadd.xlane.f32.xlu0 %v278
        %v280 = vpop.xlane.xlu0 %279
        %v281 = vrcp.pop %v280
        %v282 = vmul.f32 %v280, %v281
        %v283 = vsub.f32 2.0, %v282
        %v284 = vmul.f32 %v281, %v283
        %v285 = vmul.f32 %v277, %v284
        %286 = vst.msk [vmem:[%s191] sm:$0x1] %vm271, %v285
        %s287 = sand.u32 %s82, 1
        %s288 = scalar_lea.sflag [#allocation4], %s287
        %s289 = sand.u32 %s82, 1
        %s290 = scalar_lea.vmem [#allocation7], %s289
        // Predicated region
        $region37: #{tpu_custom_call.1} parent=27 // pred_check
          %p291 = pneg %p92
        $region38: #{tpu_custom_call.1} parent=27 // pred_check_branch
          %293 = sbr.rel (%p291) target = $region40
        $region39: #{tpu_custom_call.1} parent=27 // pred_region
          %s295 = ssub.s32 16, 16
          %296 = vsyncadd %s288, %s295
          %s297 = smul.addr %s22, 16
          %s298 = scalar_lea.hbm %s2, %s297
          %s300 = sshll.u32 %s290, 4
          %s301 = int_to_ptr.vmem [resolvable:$true] %s300
          %303 = dma.vmem_to_hbm [thread:$0]  %s301, 16, %s298, %s288
        $region40: #{tpu_custom_call.1} parent=27 // pred_fallthru
          _
      $region28: #{tpu_custom_call.1} parent=5 // pred_fallthru
        _
      %p304 = scmp.le.s32.totalorder 2, %s17
      // Predicated region
      $region41: #{tpu_custom_call.1} parent=5 // pred_check
        %p305 = pneg %p304
      $region42: #{tpu_custom_call.1} parent=5 // pred_check_branch
        %307 = sbr.rel (%p305) target = $region44
      $region43: #{tpu_custom_call.1} parent=5 // pred_region
        %s308 = ssub.s32 %s17, 2
        // Predicated region
        $region45: #{tpu_custom_call.1} parent=43 // pred_check
          %p309 = pneg %p98
        $region46: #{tpu_custom_call.1} parent=43 // pred_check_branch
          %311 = sbr.rel (%p309) target = $region48
        $region47: #{tpu_custom_call.1} parent=43 // pred_region
          %s312 = sand.u32 %s83, 1
          %s313 = scalar_lea.sflag [#allocation4], %s312
          %s314 = sand.u32 %s83, 1
          %s315 = scalar_lea.vmem [#allocation7], %s314
          %316 = dma.done %s313, 16
        $region48: #{tpu_custom_call.1} parent=43 // pred_fallthru
          _
      $region44: #{tpu_custom_call.1} parent=5 // pred_fallthru
        _
    $region6: #{tpu_custom_call.1} parent=1 // loop_footer
      %s21 = sadd.s32 1, %s17
    $region7: #{tpu_custom_call.1} parent=1 // loop_footer_branch
      %16 = sbr.rel target = $region3
    $region8: #{tpu_custom_call.1} parent=1 // loop_exit
      _
    %317 = vsyncpa [#allocation3], 1
    %s318 = scalar_lea.sflag [#allocation3], 1
    %319 = vsyncpa %s318, 1
    %320 = vsyncpa [#allocation6], 1
    %s321 = scalar_lea.sflag [#allocation6], 1
    %322 = vsyncpa %s321, 1
    %323 = vsyncpa [#allocation4], 1
    %s324 = scalar_lea.sflag [#allocation4], 1
    %325 = vsyncpa %s324, 1

</llo_original>
